<compile_context>
chip_gen: v5e
topology: v5e:2x2
jax: 0.10.0
libtpu: 0.0.40
codegen_flags: <defaults>
</compile_context>

<pallas_src>
import jax
import jax.numpy as jnp
from jax.experimental import pallas as pl
from jax.experimental.pallas import tpu as pltpu


def _make_rdb_conv_kernel(H, W, Cin, G, B):
    HW = H * W

    def kernel(x_ref, w_ref, b_ref, o_ref):
        # x_ref : (B, Cin, HW)     f32   input images, spatial flattened (lane-dense)
        # w_ref : (G, 9*Cin)       bf16  conv weights, columns ordered (kh, kw, c)
        # b_ref : (G, 1)           f32   bias
        # o_ref : (B, Cin+G, HW)   f32   [x ; relu(conv(x)+b)]  (fused concat)
        x = x_ref[...]                                  # (B, Cin, HW) f32

        # Passthrough channels: exact f32 copy of the input (torch.cat semantics).
        o_ref[:, :Cin, :] = x

        # Edge predicates along the flattened lane axis, computed once per block.
        # Row tests need no div/mod (row >= 1  <=>  pos >= W); col tests need one
        # mod, which lowers to an AND for power-of-two W.
        pos = jax.lax.broadcasted_iota(jnp.int32, (1, 1, HW), 2)
        col = pos % W
        not_top = pos >= W                   # row >= 1      (needed when dh == -1)
        not_bot = pos < (H - 1) * W          # row <= H - 2  (needed when dh == +1)
        not_lft = col >= 1                   # col >= 1      (needed when dw == -1)
        not_rgt = col <= W - 2               # col <= W - 2  (needed when dw == +1)

        # Build the 9 conv taps by lane-rotating the flattened image and masking
        # out-of-bounds lanes (this realizes SAME zero padding in-register).
        patches = []
        for kh in range(3):
            for kw in range(3):
                dh, dw = kh - 1, kw - 1
                shift = (-(dh * W + dw)) % HW
                shifted = x if shift == 0 else pltpu.roll(x, shift=shift, axis=2)
                mask = None
                if dh == -1:
                    mask = not_top
                elif dh == 1:
                    mask = not_bot
                if dw == -1:
                    mask = not_lft if mask is None else (mask & not_lft)
                elif dw == 1:
                    mask = not_rgt if mask is None else (mask & not_rgt)
                if mask is not None:
                    shifted = jnp.where(mask, shifted, 0.0)
                patches.append(shifted.astype(jnp.bfloat16))

        im2col = jnp.concatenate(patches, axis=1)       # (B, 9*Cin, HW) bf16

        w = w_ref[...]                                  # (G, 9*Cin) bf16
        bias = b_ref[...]                               # (G, 1)     f32
        # One K = 9*Cin MXU contraction per image (B is static -> unrolled),
        # bf16 operands, f32 accumulation, then bias + ReLU epilogue.
        for b in range(B):
            acc = jnp.dot(w, im2col[b], preferred_element_type=jnp.float32)  # (G, HW)
            acc = jnp.maximum(acc + bias, 0.0)
            o_ref[b, Cin:, :] = acc.astype(o_ref.dtype)

    return kernel


def _pick_batch_block(N, Cin, G, HW):
    """Images per grid step: amortize per-step overhead while staying well under
    v5e's 16 MiB scoped-VMEM default and keeping >= 2 grid steps for v7x's 2 TCs."""
    # Per-image VMEM bytes: double-buffered f32 in/out blocks + bf16 im2col + f32 acc.
    per_img = (2 * (Cin * HW * 4 + (Cin + G) * HW * 4)
               + 9 * Cin * HW * 2 + G * HW * 4)
    budget = 8 << 20
    b = max(1, min(budget // per_img, 8))   # cap the in-kernel unroll over B
    if N >= 2:
        b = min(b, pl.cdiv(N, 2))           # keep >= 2 parallel steps (megacore)
    return int(min(b, N))


@jax.jit
def rdb_conv_pallas(x_nchw, weight_oihw, bias):
    """x_nchw: (N, Cin, H, W) f32, weight_oihw: (G, Cin, 3, 3), bias: (G,)
    -> (N, Cin + G, H, W) f32, matching torch.cat((x, relu(conv(x))), 1)."""
    N, Cin, H, W = x_nchw.shape
    G = weight_oihw.shape[0]
    HW = H * W

    B = _pick_batch_block(N, Cin, G, HW)
    n_blocks = pl.cdiv(N, B)
    N_pad = n_blocks * B

    # Free (contiguous) reshape: spatial flattened onto the lane axis.
    x_flat = x_nchw.reshape(N, Cin, HW)
    if N_pad != N:
        x_flat = jnp.pad(x_flat, ((0, N_pad - N), (0, 0), (0, 0)))

    # Weight columns ordered (kh, kw, c) to match the im2col row order; bf16 for MXU.
    w_flat = jnp.transpose(weight_oihw, (0, 2, 3, 1)).reshape(G, 9 * Cin)
    w_flat = w_flat.astype(jnp.bfloat16)
    b2d = bias.reshape(G, 1).astype(jnp.float32)

    kernel = _make_rdb_conv_kernel(H, W, Cin, G, B)

    flops = 2 * N * HW * 9 * Cin * G
    bytes_accessed = (x_flat.size * 4 + w_flat.size * 2 + b2d.size * 4
                      + N_pad * (Cin + G) * HW * 4)

    # Explicit scoped-VMEM request (tiny for this kernel; safe on v5e/v6e/v7x).
    per_step_bytes = (2 * B * (Cin + (Cin + G)) * HW * 4
                      + B * (9 * Cin * HW * 2 + G * HW * 4)
                      + 9 * Cin * G * 2 + G * 4)
    vmem_limit = int(min(max(2 * per_step_bytes, 4 << 20), 16 << 20))

    out_flat = pl.pallas_call(
        kernel,
        out_shape=jax.ShapeDtypeStruct((N_pad, Cin + G, HW), x_nchw.dtype),
        grid_spec=pltpu.PrefetchScalarGridSpec(
            num_scalar_prefetch=0,
            grid=(n_blocks,),
            in_specs=[
                pl.BlockSpec((B, Cin, HW), lambda n: (n, 0, 0)),
                pl.BlockSpec((G, 9 * Cin), lambda n: (0, 0)),
                pl.BlockSpec((G, 1), lambda n: (0, 0)),
            ],
            out_specs=pl.BlockSpec((B, Cin + G, HW), lambda n: (n, 0, 0)),
        ),
        compiler_params=pltpu.CompilerParams(
            dimension_semantics=("parallel",),
            vmem_limit_bytes=vmem_limit,
        ),
        cost_estimate=pl.CostEstimate(
            flops=flops, transcendentals=0, bytes_accessed=bytes_accessed),
    )(x_flat, w_flat, b2d)

    if N_pad != N:
        out_flat = out_flat[:N]
    # Free (contiguous) reshape back to NCHW.
    return out_flat.reshape(N, Cin + G, H, W)


def _reference(x_nchw, weight_oihw, bias):
    # Pure-JAX reference with the same bf16-operand / f32-accumulate precision.
    out = jax.lax.conv_general_dilated(
        x_nchw.astype(jnp.bfloat16), weight_oihw.astype(jnp.bfloat16),
        window_strides=(1, 1), padding="SAME",
        dimension_numbers=("NCHW", "OIHW", "NCHW"),
        preferred_element_type=jnp.float32)
    out = jnp.maximum(out + bias[None, :, None, None], 0.0)
    return jnp.concatenate([x_nchw, out], axis=1)


if __name__ == "__main__":
    # Module config: RDB_Conv(inChannels=4, growRate=8, kSize=3)
    N, Cin, H, W = 2, 4, 16, 16
    G, K = 8, 3

    key = jax.random.PRNGKey(0)
    kx, kw_, kb = jax.random.split(key, 3)

    x = jax.random.normal(kx, (N, Cin, H, W), dtype=jnp.float32)
    fan_in = Cin * K * K
    weight = jax.random.normal(kw_, (G, Cin, K, K), dtype=jnp.float32) / jnp.sqrt(fan_in)
    bias = jax.random.normal(kb, (G,), dtype=jnp.float32) * 0.01

    out = jax.block_until_ready(rdb_conv_pallas(x, weight, bias))

    ref = _reference(x, weight, bias)
    assert out.shape == (N, Cin + G, H, W), out.shape
    # Passthrough channels must be exactly the f32 input (torch.cat semantics).
    assert jnp.array_equal(out[:, :Cin], x)
    err = float(jnp.max(jnp.abs(out - ref)))
    assert jnp.allclose(out, ref, atol=2e-3, rtol=2e-3), err

    print("KERNEL_OK")
</pallas_src>

<mosaic_0001>
module attributes {stable_mosaic.version = 11 : i64} {
  func.func @kernel(%arg0: i32, %arg1: memref<1x4x256xf32, #tpu.memory_space<vmem>>, %arg2: memref<8x36xbf16, #tpu.memory_space<vmem>>, %arg3: memref<8x1xf32, #tpu.memory_space<vmem>>, %arg4: memref<1x12x256xf32, #tpu.memory_space<vmem>>) attributes {dimension_semantics = [#tpu.dimension_semantics<parallel>], iteration_bounds = array<i64: 2>, scalar_prefetch = 0 : i64, scratch_operands = 0 : i64, tpu.core_type = #tpu.core_type<tc>, window_params = [{transform_indices = @transform_0, window_bounds = array<i64: 1, 4, 256>}, {pipeline_mode = #tpu.pipeline_mode<synchronous>, transform_indices = @transform_1, window_bounds = array<i64: 8, 36>}, {pipeline_mode = #tpu.pipeline_mode<synchronous>, transform_indices = @transform_2, window_bounds = array<i64: 8, 1>}, {transform_indices = @transform_3, window_bounds = array<i64: 1, 12, 256>}]} {
    %c0 = arith.constant 0 : index
    %c0_0 = arith.constant 0 : index
    %c0_1 = arith.constant 0 : index
    %0 = vector.load %arg1[%c0, %c0_0, %c0_1] : memref<1x4x256xf32, #tpu.memory_space<vmem>>, vector<1x4x256xf32>
    %c0_2 = arith.constant 0 : index
    %c0_3 = arith.constant 0 : index
    %c0_4 = arith.constant 0 : index
    %1 = vector.load %arg4[%c0_2, %c0_3, %c0_4] : memref<1x12x256xf32, #tpu.memory_space<vmem>>, vector<1x4x256xf32>
    tpu.vector_store %arg4[%c0_2, %c0_3, %c0_4], %0 {strides = array<i32>} : memref<1x12x256xf32, #tpu.memory_space<vmem>>, vector<1x4x256xf32>,
    %2 = tpu.iota {dimensions = array<i32: 2>} : vector<1x1x256xi32>
    %c16_i32 = arith.constant 16 : i32
    %c0_i32 = arith.constant 0 : i32
    %3 = arith.cmpi eq, %c16_i32, %c0_i32 : i32
    %c1_i32 = arith.constant 1 : i32
    %4 = arith.select %3, %c1_i32, %c16_i32 : i32
    %5 = vector.broadcast %4 : i32 to vector<1x1x256xi32>
    %6 = arith.remsi %2, %5 : vector<1x1x256xi32>
    %c0_i32_5 = arith.constant 0 : i32
    %7 = vector.broadcast %c0_i32_5 : i32 to vector<1x1x256xi32>
    %8 = arith.cmpi ne, %6, %7 : vector<1x1x256xi32>
    %c0_i32_6 = arith.constant 0 : i32
    %9 = vector.broadcast %c0_i32_6 : i32 to vector<1x1x256xi32>
    %10 = arith.cmpi slt, %6, %9 : vector<1x1x256xi32>
    %c0_i32_7 = arith.constant 0 : i32
    %11 = arith.cmpi slt, %4, %c0_i32_7 : i32
    %12 = vector.broadcast %11 : i1 to vector<1x1x256xi1>
    %13 = vector.broadcast %12 : vector<1x1x256xi1> to vector<1x1x256xi1>
    %14 = arith.xori %10, %13 : vector<1x1x256xi1>
    %15 = arith.andi %14, %8 : vector<1x1x256xi1>
    %16 = vector.broadcast %4 : i32 to vector<1x1x256xi32>
    %17 = arith.addi %6, %16 : vector<1x1x256xi32>
    %18 = arith.select %15, %17, %6 : vector<1x1x256xi1>, vector<1x1x256xi32>
    %c16_i32_8 = arith.constant 16 : i32
    %19 = vector.broadcast %c16_i32_8 : i32 to vector<1x1x256xi32>
    %20 = arith.cmpi sge, %2, %19 : vector<1x1x256xi32>
    %c240_i32 = arith.constant 240 : i32
    %21 = vector.broadcast %c240_i32 : i32 to vector<1x1x256xi32>
    %22 = arith.cmpi slt, %2, %21 : vector<1x1x256xi32>
    %c1_i32_9 = arith.constant 1 : i32
    %23 = vector.broadcast %c1_i32_9 : i32 to vector<1x1x256xi32>
    %24 = arith.cmpi sge, %18, %23 : vector<1x1x256xi32>
    %c14_i32 = arith.constant 14 : i32
    %25 = vector.broadcast %c14_i32 : i32 to vector<1x1x256xi32>
    %26 = arith.cmpi sle, %18, %25 : vector<1x1x256xi32>
    %c17_i32 = arith.constant 17 : i32
    %27 = tpu.dynamic_rotate %0 by %c17_i32 dim 2 : vector<1x4x256xf32>, i32 -> vector<1x4x256xf32>
    %28 = arith.andi %20, %24 : vector<1x1x256xi1>
    %cst = arith.constant 0.000000e+00 : f32
    %29 = vector.shape_cast %28 : vector<1x1x256xi1> to vector<1x1x256xi1>
    %30 = vector.broadcast %29 : vector<1x1x256xi1> to vector<1x4x256xi1>
    %31 = vector.broadcast %cst : f32 to vector<1x4x256xf32>
    %32 = arith.select %30, %27, %31 : vector<1x4x256xi1>, vector<1x4x256xf32>
    %33 = arith.truncf %32 : vector<1x4x256xf32> to vector<1x4x256xbf16>
    %c16_i32_10 = arith.constant 16 : i32
    %34 = tpu.dynamic_rotate %0 by %c16_i32_10 dim 2 : vector<1x4x256xf32>, i32 -> vector<1x4x256xf32>
    %cst_11 = arith.constant 0.000000e+00 : f32
    %35 = vector.shape_cast %20 : vector<1x1x256xi1> to vector<1x1x256xi1>
    %36 = vector.broadcast %35 : vector<1x1x256xi1> to vector<1x4x256xi1>
    %37 = vector.broadcast %cst_11 : f32 to vector<1x4x256xf32>
    %38 = arith.select %36, %34, %37 : vector<1x4x256xi1>, vector<1x4x256xf32>
    %39 = arith.truncf %38 : vector<1x4x256xf32> to vector<1x4x256xbf16>
    %c15_i32 = arith.constant 15 : i32
    %40 = tpu.dynamic_rotate %0 by %c15_i32 dim 2 : vector<1x4x256xf32>, i32 -> vector<1x4x256xf32>
    %41 = arith.andi %20, %26 : vector<1x1x256xi1>
    %cst_12 = arith.constant 0.000000e+00 : f32
    %42 = vector.shape_cast %41 : vector<1x1x256xi1> to vector<1x1x256xi1>
    %43 = vector.broadcast %42 : vector<1x1x256xi1> to vector<1x4x256xi1>
    %44 = vector.broadcast %cst_12 : f32 to vector<1x4x256xf32>
    %45 = arith.select %43, %40, %44 : vector<1x4x256xi1>, vector<1x4x256xf32>
    %46 = arith.truncf %45 : vector<1x4x256xf32> to vector<1x4x256xbf16>
    %c1_i32_13 = arith.constant 1 : i32
    %47 = tpu.dynamic_rotate %0 by %c1_i32_13 dim 2 : vector<1x4x256xf32>, i32 -> vector<1x4x256xf32>
    %cst_14 = arith.constant 0.000000e+00 : f32
    %48 = vector.shape_cast %24 : vector<1x1x256xi1> to vector<1x1x256xi1>
    %49 = vector.broadcast %48 : vector<1x1x256xi1> to vector<1x4x256xi1>
    %50 = vector.broadcast %cst_14 : f32 to vector<1x4x256xf32>
    %51 = arith.select %49, %47, %50 : vector<1x4x256xi1>, vector<1x4x256xf32>
    %52 = arith.truncf %51 : vector<1x4x256xf32> to vector<1x4x256xbf16>
    %53 = arith.truncf %0 : vector<1x4x256xf32> to vector<1x4x256xbf16>
    %c255_i32 = arith.constant 255 : i32
    %54 = tpu.dynamic_rotate %0 by %c255_i32 dim 2 : vector<1x4x256xf32>, i32 -> vector<1x4x256xf32>
    %cst_15 = arith.constant 0.000000e+00 : f32
    %55 = vector.shape_cast %26 : vector<1x1x256xi1> to vector<1x1x256xi1>
    %56 = vector.broadcast %55 : vector<1x1x256xi1> to vector<1x4x256xi1>
    %57 = vector.broadcast %cst_15 : f32 to vector<1x4x256xf32>
    %58 = arith.select %56, %54, %57 : vector<1x4x256xi1>, vector<1x4x256xf32>
    %59 = arith.truncf %58 : vector<1x4x256xf32> to vector<1x4x256xbf16>
    %c241_i32 = arith.constant 241 : i32
    %60 = tpu.dynamic_rotate %0 by %c241_i32 dim 2 : vector<1x4x256xf32>, i32 -> vector<1x4x256xf32>
    %61 = arith.andi %22, %24 : vector<1x1x256xi1>
    %cst_16 = arith.constant 0.000000e+00 : f32
    %62 = vector.shape_cast %61 : vector<1x1x256xi1> to vector<1x1x256xi1>
    %63 = vector.broadcast %62 : vector<1x1x256xi1> to vector<1x4x256xi1>
    %64 = vector.broadcast %cst_16 : f32 to vector<1x4x256xf32>
    %65 = arith.select %63, %60, %64 : vector<1x4x256xi1>, vector<1x4x256xf32>
    %66 = arith.truncf %65 : vector<1x4x256xf32> to vector<1x4x256xbf16>
    %c240_i32_17 = arith.constant 240 : i32
    %67 = tpu.dynamic_rotate %0 by %c240_i32_17 dim 2 : vector<1x4x256xf32>, i32 -> vector<1x4x256xf32>
    %cst_18 = arith.constant 0.000000e+00 : f32
    %68 = vector.shape_cast %22 : vector<1x1x256xi1> to vector<1x1x256xi1>
    %69 = vector.broadcast %68 : vector<1x1x256xi1> to vector<1x4x256xi1>
    %70 = vector.broadcast %cst_18 : f32 to vector<1x4x256xf32>
    %71 = arith.select %69, %67, %70 : vector<1x4x256xi1>, vector<1x4x256xf32>
    %72 = arith.truncf %71 : vector<1x4x256xf32> to vector<1x4x256xbf16>
    %c239_i32 = arith.constant 239 : i32
    %73 = tpu.dynamic_rotate %0 by %c239_i32 dim 2 : vector<1x4x256xf32>, i32 -> vector<1x4x256xf32>
    %74 = arith.andi %22, %26 : vector<1x1x256xi1>
    %cst_19 = arith.constant 0.000000e+00 : f32
    %75 = vector.shape_cast %74 : vector<1x1x256xi1> to vector<1x1x256xi1>
    %76 = vector.broadcast %75 : vector<1x1x256xi1> to vector<1x4x256xi1>
    %77 = vector.broadcast %cst_19 : f32 to vector<1x4x256xf32>
    %78 = arith.select %76, %73, %77 : vector<1x4x256xi1>, vector<1x4x256xf32>
    %79 = arith.truncf %78 : vector<1x4x256xf32> to vector<1x4x256xbf16>
    %80 = tpu.concatenate %33, %39, %46, %52, %53, %59, %66, %72, %79 in 1 : vector<1x4x256xbf16>, vector<1x4x256xbf16>, vector<1x4x256xbf16>, vector<1x4x256xbf16>, vector<1x4x256xbf16>, vector<1x4x256xbf16>, vector<1x4x256xbf16>, vector<1x4x256xbf16>, vector<1x4x256xbf16> -> vector<1x36x256xbf16>
    %c0_20 = arith.constant 0 : index
    %c0_21 = arith.constant 0 : index
    %81 = vector.load %arg2[%c0_20, %c0_21] : memref<8x36xbf16, #tpu.memory_space<vmem>>, vector<8x36xbf16>
    %c0_22 = arith.constant 0 : index
    %c0_23 = arith.constant 0 : index
    %82 = vector.load %arg3[%c0_22, %c0_23] : memref<8x1xf32, #tpu.memory_space<vmem>>, vector<8x1xf32>
    %83 = vector.shape_cast %80 : vector<1x36x256xbf16> to vector<36x256xbf16>
    %cst_24 = arith.constant dense<0.000000e+00> : vector<8x256xf32>
    %84 = tpu.matmul %81, %83, %cst_24 {dimension_numbers = #tpu.dot_dimension_numbers<[1], [0], [0], [1], [0, 0, 1, 1], [], []>} : vector<8x36xbf16>, vector<36x256xbf16>, vector<8x256xf32> -> vector<8x256xf32>
    %85 = vector.broadcast %82 : vector<8x1xf32> to vector<8x256xf32>
    %86 = arith.addf %84, %85 : vector<8x256xf32>
    %cst_25 = arith.constant 0.000000e+00 : f32
    %87 = vector.broadcast %cst_25 : f32 to vector<8x256xf32>
    %88 = arith.maximumf %86, %87 : vector<8x256xf32>
    %c0_26 = arith.constant 0 : index
    %c4 = arith.constant 4 : index
    %c0_27 = arith.constant 0 : index
    %89 = vector.load %arg4[%c0_26, %c4, %c0_27] : memref<1x12x256xf32, #tpu.memory_space<vmem>>, vector<1x8x256xf32>
    %90 = vector.shape_cast %89 : vector<1x8x256xf32> to vector<8x256xf32>
    %91 = vector.shape_cast %88 : vector<8x256xf32> to vector<1x8x256xf32>
    tpu.vector_store %arg4[%c0_26, %c4, %c0_27], %91 {strides = array<i32>} : memref<1x12x256xf32, #tpu.memory_space<vmem>>, vector<1x8x256xf32>,
    return
  }
  func.func @transform_0(%arg0: i32) -> (i32, i32, i32) {
    %c0_i32 = arith.constant 0 : i32
    %c0_i32_0 = arith.constant 0 : i32
    %c0_i32_1 = arith.constant 0 : i32
    return %arg0, %c0_i32, %c0_i32_0 : i32, i32, i32
  }
  func.func @transform_1(%arg0: i32) -> (i32, i32) {
    %c0_i32 = arith.constant 0 : i32
    %c0_i32_0 = arith.constant 0 : i32
    %c0_i32_1 = arith.constant 0 : i32
    return %c0_i32, %c0_i32_0 : i32, i32
  }
  func.func @transform_2(%arg0: i32) -> (i32, i32) {
    %c0_i32 = arith.constant 0 : i32
    %c0_i32_0 = arith.constant 0 : i32
    %c0_i32_1 = arith.constant 0 : i32
    return %c0_i32, %c0_i32_0 : i32, i32
  }
  func.func @transform_3(%arg0: i32) -> (i32, i32, i32) {
    %c0_i32 = arith.constant 0 : i32
    %c0_i32_0 = arith.constant 0 : i32
    %c0_i32_1 = arith.constant 0 : i32
    return %arg0, %c0_i32, %c0_i32_0 : i32, i32, i32
  }
}

</mosaic_0001>

<llo_original>
// kernel: rdb_conv_pallas.1
$region0: #{rdb_conv_pallas.1}
  #allocation0 [shape = 'u32[]', space=smem, size = 0x4, offset = 0x4, fixed_abs, tag = 'smem constant byte address 0x4 - core index']
  #allocation1 [shape = 'u32[72,128]{1,0:T(1,128)}', space=vmem, size = 0x9000, scoped, tag = 'internal scratch']
  %s0 = inlined_call_operand.vmem [shape: f32[2,4,256], index: 0, kind: input, shape index: {}]
  %s1 = inlined_call_operand.vmem [shape: bf16[8,36], index: 1, kind: input, shape index: {}]
  %s2 = inlined_call_operand.vmem [shape: f32[8,1], index: 2, kind: input, shape index: {}]
  %s3 = inlined_call_operand.vmem [shape: f32[2,12,256], index: 3, kind: output, shape index: {}]
  %s4 = sld [smem:[#allocation0]]
  $region45: #{rdb_conv_pallas.1} parent=0
    _
  %s6 = ssub.s32 1, %s4
  %s7 = scalar_select 0, %s6, %s4
  loop: start=0, step=1, limit=4
  $region2: #{rdb_conv_pallas.1} parent=0 // loop_pre_header
    _
  $region3: #{rdb_conv_pallas.1} parent=0 // loop_header
    %s9 = sphi 0, %s13
    %p10 = scmp.ge.s32.totalorder %s9, 4
    %s19 = sphi 0, %s21
    %s22 = sphi 0, %s19
    %s23 = sphi 0, %s22
    %s39 = sphi 0, %s23
    %s43 = sphi 0, %s43
    %s45 = sphi 0, %s43
    %s46 = sphi 0, %s45
    %s60 = sphi 0, %s46
    %s64 = sphi 0, %s64
    %s66 = sphi 0, %s64
    %s67 = sphi 0, %s66
    %s81 = sphi 0, %s67
    %s87 = sphi 0, %s89
    %s90 = sphi 0, %s87
    %s91 = sphi 0, %s90
    %s107 = sphi 0, %s91
  $region4: #{rdb_conv_pallas.1} parent=0 // loop_header_branch
    %12 = sbr.rel (%p10) target = $region8
  $region5: #{rdb_conv_pallas.1} parent=0 // loop_body
    %s14 = ssub.s32 %s9, 1
    %s15 = ssub.s32 %s9, 2
    %s16 = sadd.s32 %s9, 1
    %s17 = ssub.s32 %s9, %s16
    %p18 = scmp.eq.s32.totalorder %s17, 0
    %s20 = sadd.s32 %s19, 1
    %s21 = scalar_select %p18, %s19, %s20
    %p24 = pneg %p18
    %p25 = scmp.eq.s32.totalorder %s9, 1
    %p26 = por %p24, %p25
    %p27 = scmp.ne.s32.totalorder %s19, %s22
    %p28 = scmp.eq.s32.totalorder %s9, 0
    %p29 = por %p27, %p28
    %p30 = scmp.ne.s32.totalorder %s19, %s22
    %p31 = scmp.eq.s32.totalorder %s14, 1
    %p32 = por %p30, %p31
    %p33 = scmp.ne.s32.totalorder %s22, %s23
    %p34 = scmp.eq.s32.totalorder %s14, 0
    %p35 = por %p33, %p34
    %p36 = scmp.ne.s32.totalorder %s22, %s23
    %p37 = scmp.eq.s32.totalorder %s15, 1
    %p38 = por %p36, %p37
    %p40 = scmp.ne.s32.totalorder %s23, %s39
    %p41 = scmp.eq.s32.totalorder %s15, 0
    %p42 = por %p40, %p41
    %s44 = sadd.s32 %s43, 1
    %p47 = scmp.eq.s32.totalorder %s9, 1
    %p48 = scmp.ne.s32.totalorder %s43, %s45
    %p49 = scmp.eq.s32.totalorder %s9, 0
    %p50 = por %p48, %p49
    %p51 = scmp.ne.s32.totalorder %s43, %s45
    %p52 = scmp.eq.s32.totalorder %s14, 1
    %p53 = por %p51, %p52
    %p54 = scmp.ne.s32.totalorder %s45, %s46
    %p55 = scmp.eq.s32.totalorder %s14, 0
    %p56 = por %p54, %p55
    %p57 = scmp.ne.s32.totalorder %s45, %s46
    %p58 = scmp.eq.s32.totalorder %s15, 1
    %p59 = por %p57, %p58
    %p61 = scmp.ne.s32.totalorder %s46, %s60
    %p62 = scmp.eq.s32.totalorder %s15, 0
    %p63 = por %p61, %p62
    %s65 = sadd.s32 %s64, 1
    %p68 = scmp.eq.s32.totalorder %s9, 1
    %p69 = scmp.ne.s32.totalorder %s64, %s66
    %p70 = scmp.eq.s32.totalorder %s9, 0
    %p71 = por %p69, %p70
    %p72 = scmp.ne.s32.totalorder %s64, %s66
    %p73 = scmp.eq.s32.totalorder %s14, 1
    %p74 = por %p72, %p73
    %p75 = scmp.ne.s32.totalorder %s66, %s67
    %p76 = scmp.eq.s32.totalorder %s14, 0
    %p77 = por %p75, %p76
    %p78 = scmp.ne.s32.totalorder %s66, %s67
    %p79 = scmp.eq.s32.totalorder %s15, 1
    %p80 = por %p78, %p79
    %p82 = scmp.ne.s32.totalorder %s67, %s81
    %p83 = scmp.eq.s32.totalorder %s15, 0
    %p84 = por %p82, %p83
    %s85 = ssub.s32 %s9, %s16
    %p86 = scmp.eq.s32.totalorder %s85, 0
    %s88 = sadd.s32 %s87, 1
    %s89 = scalar_select %p86, %s87, %s88
    %p92 = pneg %p86
    %p93 = scmp.eq.s32.totalorder %s9, 1
    %p94 = por %p92, %p93
    %p95 = scmp.ne.s32.totalorder %s87, %s90
    %p96 = scmp.eq.s32.totalorder %s9, 0
    %p97 = por %p95, %p96
    %p98 = scmp.ne.s32.totalorder %s87, %s90
    %p99 = scmp.eq.s32.totalorder %s14, 1
    %p100 = por %p98, %p99
    %p101 = scmp.ne.s32.totalorder %s90, %s91
    %p102 = scmp.eq.s32.totalorder %s14, 0
    %p103 = por %p101, %p102
    %p104 = scmp.ne.s32.totalorder %s90, %s91
    %p105 = scmp.eq.s32.totalorder %s15, 1
    %p106 = por %p104, %p105
    %p108 = scmp.ne.s32.totalorder %s91, %s107
    %p109 = scmp.eq.s32.totalorder %s15, 0
    %p110 = por %p108, %p109
    %p111 = scmp.le.s32.totalorder 1, %s9
    %p112 = scmp.lt.s32.totalorder %s9, 3
    %p113 = pnand %p111, %p112
    %p114 = pneg %p113
    // Predicated region
    $region9: #{rdb_conv_pallas.1} parent=5 // pred_check
      _
    $region10: #{rdb_conv_pallas.1} parent=5 // pred_check_branch
      %116 = sbr.rel (%p113) target = $region12
    $region11: #{rdb_conv_pallas.1} parent=5 // pred_region
      %s117 = ssub.s32 %s9, 1
      // Predicated region
      $region13: #{rdb_conv_pallas.1} parent=11 // pred_check
        %p118 = pneg %p56
      $region14: #{rdb_conv_pallas.1} parent=11 // pred_check_branch
        %120 = sbr.rel (%p118) target = $region16
      $region15: #{rdb_conv_pallas.1} parent=11 // pred_region
        _
      $region16: #{rdb_conv_pallas.1} parent=11 // pred_fallthru
        _
      // Predicated region
      $region17: #{rdb_conv_pallas.1} parent=11 // pred_check
        %p121 = pneg %p77
      $region18: #{rdb_conv_pallas.1} parent=11 // pred_check_branch
        %123 = sbr.rel (%p121) target = $region20
      $region19: #{rdb_conv_pallas.1} parent=11 // pred_region
        _
      $region20: #{rdb_conv_pallas.1} parent=11 // pred_fallthru
        _
    $region12: #{rdb_conv_pallas.1} parent=5 // pred_fallthru
      _
    %p124 = scmp.lt.s32.totalorder %s9, 2
    // Predicated region
    $region21: #{rdb_conv_pallas.1} parent=5 // pred_check
      %p125 = pneg %p124
    $region22: #{rdb_conv_pallas.1} parent=5 // pred_check_branch
      %127 = sbr.rel (%p125) target = $region24
    $region23: #{rdb_conv_pallas.1} parent=5 // pred_region
      // Predicated region
      $region25: #{rdb_conv_pallas.1} parent=23 // pred_check
        %p128 = pneg %p29
      $region26: #{rdb_conv_pallas.1} parent=23 // pred_check_branch
        %130 = sbr.rel (%p128) target = $region28
      $region27: #{rdb_conv_pallas.1} parent=23 // pred_region
        %p131 = scmp.lt.s32.totalorder %s9, 1
        %s132 = scalar_select %p131, %s9, 1
        %s133 = smul.addr %s132, 2
        %s134 = smul.addr %s133, 4
        %s135 = scalar_lea.vmem %s0, %s134
      $region28: #{rdb_conv_pallas.1} parent=23 // pred_fallthru
        _
    $region24: #{rdb_conv_pallas.1} parent=5 // pred_fallthru
      _
    %p136 = scmp.le.s32.totalorder 1, %s9
    %p137 = scmp.lt.s32.totalorder %s9, 3
    %p138 = pnand %p136, %p137
    %p139 = pneg %p138
    // Predicated region
    $region29: #{rdb_conv_pallas.1} parent=5 // pred_check
      _
    $region30: #{rdb_conv_pallas.1} parent=5 // pred_check_branch
      %141 = sbr.rel (%p138) target = $region32
    $region31: #{rdb_conv_pallas.1} parent=5 // pred_region
      %s142 = ssub.s32 %s9, 1
      %p143 = scmp.lt.s32.totalorder %s14, 1
      %s144 = scalar_select %p143, %s14, 1
      %s145 = smul.addr %s144, 2
      %s146 = smul.addr %s145, 4
      %s147 = scalar_lea.vmem %s0, %s146
      %p148 = pneg %p35
      %p149 = pneg %p32
      %p150 = pneg %p56
      %p151 = pneg %p53
      %p152 = pneg %p77
      %p153 = pneg %p74
      %p154 = pneg %p103
      %p155 = pneg %p100
      %p156 = scmp.lt.s32.totalorder %s14, 1
      %s157 = scalar_select %p156, %s14, 1
      %s158 = smul.addr %s157, 4
      %s159 = smul.addr %s158, 8
      %s160 = scalar_lea.vmem %s3, %s159
      %p161 = scmp.lt.s32.totalorder %s14, 1
      %s162 = scalar_select %p161, %s14, 1
      %s163 = smul.addr %s162, 2
      %s164 = smul.addr %s163, 4
      %s165 = scalar_lea.vmem %s0, %s164
      %p166 = scmp.lt.s32.totalorder %s14, 1
      %s167 = scalar_select %p166, %s14, 1
      %s168 = smul.addr %s167, 4
      %s169 = smul.addr %s168, 8
      %s170 = scalar_lea.vmem %s3, %s169
      %v172 = vld [vmem:[%s165] sm:$0xff]
      %174 = vst [vmem:[#allocation1] ss:$2 sm:$0xff] %v172
      %v175 = vld.sshfl [vmem:[#allocation1] sm:$0xff pattern:$0x75316420]
      %v176 = vld.sshfl [vmem:[#allocation1 + $0x8] sm:$0xff pattern:$0x75316420]
      %179 = vst [vmem:[%s170] sm:$0xf] %v175
      %180 = vst [vmem:[%s170 + $0x8] sm:$0xf] %v176
      %v181 = vlaneseq
      %v182 = vand.u32 %v181, 127
      %v183 = vadd.s32 %v182, 128
      %vm184 = vcmp.lt.s32.totalorder %v182, 0
      %v185 = vsub.s32 0, %v182
      %v186 = vsel %vm184, %v185, %v182
      %v187 = vshrl.u32 %v186, 4
      %v188 = vand.u32 %v186, 15
      %v189 = vsub.s32 0, %v188
      %v190 = vsel %vm184, %v189, %v188
      %vm191 = vcmp.lt.s32.totalorder %v183, 0
      %v192 = vsub.s32 0, %v183
      %v193 = vsel %vm191, %v192, %v183
      %v194 = vshrl.u32 %v193, 4
      %v195 = vand.u32 %v193, 15
      %v196 = vsub.s32 0, %v195
      %v197 = vsel %vm191, %v196, %v195
      %vm198 = vcmp.ne.s32.totalorder %v190, 0
      %vm199 = vcmp.ne.s32.totalorder %v197, 0
      %vm200 = vcmp.lt.s32.totalorder %v190, 0
      %vm201 = vcmp.lt.s32.totalorder %v197, 0
      %vm202 = vmand %vm200, %vm198
      %vm203 = vmand %vm201, %vm199
      %v204 = vadd.s32 %v190, 16
      %v205 = vadd.s32 %v197, 16
      %v206 = vsel %vm202, %v204, %v190
      %v207 = vsel %vm203, %v205, %v197
      %vm208 = vcmp.ge.s32.totalorder %v182, 16
      %vm209 = vcmp.ge.s32.totalorder %v183, 16
      %vm210 = vcmp.lt.s32.totalorder %v182, 240
      %vm211 = vcmp.lt.s32.totalorder %v183, 240
      %vm212 = vcmp.ge.s32.totalorder %v206, 1
      %vm213 = vcmp.ge.s32.totalorder %v207, 1
      %vm214 = vcmp.le.s32.totalorder %v206, 14
      %vm215 = vcmp.le.s32.totalorder %v207, 14
      %216 = vst [vmem:[#allocation1] ss:$2 sm:$0xff] %v172
      %v217 = vld.sshfl [vmem:[#allocation1] sm:$0xff pattern:$0x75316420]
      %v218 = vld.sshfl [vmem:[#allocation1 + $0x8] sm:$0xff pattern:$0x75316420]
      %221 = vrot.lane.b32.xlu0 %v217, 17
      %v222 = vpop.permute.xlu0 %221
      %223 = vrot.lane.b32.xlu0 %v218, 17
      %v224 = vpop.permute.xlu0 %223
      %vm225 = vcmp.lt.s32.totalorder %v182, 17
      %v226 = vsel %vm225, %v222, %v224
      %v227 = vsel %vm225, %v224, %v222
      %vm228 = vmand %vm208, %vm212
      %vm229 = vmand %vm209, %vm213
      %v230 = vsel %vm228, 1, 0
      %v231 = vsel %vm229, 1, 0
      %vm232 = vcmp.eq.s32.totalorder %v230, 1
      %vm233 = vcmp.eq.s32.totalorder %v231, 1
      %v234 = vsel %vm232, %v227, 0.0
      %v235 = vsel %vm233, %v226, 0.0
      %v236 = vpack.c.bf16 %v235, %v234
      %237 = vst [vmem:[#allocation1] ss:$2 sm:$0xff] %v172
      %v238 = vld.sshfl [vmem:[#allocation1] sm:$0xff pattern:$0x75316420]
      %v239 = vld.sshfl [vmem:[#allocation1 + $0x8] sm:$0xff pattern:$0x75316420]
      %242 = vrot.lane.b32.xlu0 %v238, 16
      %v243 = vpop.permute.xlu0 %242
      %244 = vrot.lane.b32.xlu0 %v239, 16
      %v245 = vpop.permute.xlu0 %244
      %vm246 = vcmp.lt.s32.totalorder %v182, 16
      %v247 = vsel %vm246, %v243, %v245
      %v248 = vsel %vm246, %v245, %v243
      %v249 = vsel %vm208, 1, 0
      %v250 = vsel %vm209, 1, 0
      %vm251 = vcmp.eq.s32.totalorder %v249, 1
      %vm252 = vcmp.eq.s32.totalorder %v250, 1
      %v253 = vsel %vm251, %v248, 0.0
      %v254 = vsel %vm252, %v247, 0.0
      %v255 = vpack.c.bf16 %v254, %v253
      %256 = vst [vmem:[#allocation1] ss:$2 sm:$0xff] %v172
      %v257 = vld.sshfl [vmem:[#allocation1] sm:$0xff pattern:$0x75316420]
      %v258 = vld.sshfl [vmem:[#allocation1 + $0x8] sm:$0xff pattern:$0x75316420]
      %261 = vrot.lane.b32.xlu0 %v257, 15
      %v262 = vpop.permute.xlu0 %261
      %263 = vrot.lane.b32.xlu0 %v258, 15
      %v264 = vpop.permute.xlu0 %263
      %vm265 = vcmp.lt.s32.totalorder %v182, 15
      %v266 = vsel %vm265, %v262, %v264
      %v267 = vsel %vm265, %v264, %v262
      %vm268 = vmand %vm208, %vm214
      %vm269 = vmand %vm209, %vm215
      %v270 = vsel %vm268, 1, 0
      %v271 = vsel %vm269, 1, 0
      %vm272 = vcmp.eq.s32.totalorder %v270, 1
      %vm273 = vcmp.eq.s32.totalorder %v271, 1
      %v274 = vsel %vm272, %v267, 0.0
      %v275 = vsel %vm273, %v266, 0.0
      %v276 = vpack.c.bf16 %v275, %v274
      %277 = vst [vmem:[#allocation1] ss:$2 sm:$0xff] %v172
      %v278 = vld.sshfl [vmem:[#allocation1] sm:$0xff pattern:$0x75316420]
      %v279 = vld.sshfl [vmem:[#allocation1 + $0x8] sm:$0xff pattern:$0x75316420]
      %282 = vrot.lane.b32.xlu0 %v278, 1
      %v283 = vpop.permute.xlu0 %282
      %284 = vrot.lane.b32.xlu0 %v279, 1
      %v285 = vpop.permute.xlu0 %284
      %vm286 = vcmp.lt.s32.totalorder %v182, 1
      %v287 = vsel %vm286, %v283, %v285
      %v288 = vsel %vm286, %v285, %v283
      %v289 = vsel %vm212, 1, 0
      %v290 = vsel %vm213, 1, 0
      %vm291 = vcmp.eq.s32.totalorder %v289, 1
      %vm292 = vcmp.eq.s32.totalorder %v290, 1
      %v293 = vsel %vm291, %v288, 0.0
      %v294 = vsel %vm292, %v287, 0.0
      %v295 = vpack.c.bf16 %v294, %v293
      %296 = vst [vmem:[#allocation1] ss:$2 sm:$0xff] %v172
      %v297 = vld.sshfl [vmem:[#allocation1] sm:$0xff pattern:$0x75316420]
      %v298 = vld.sshfl [vmem:[#allocation1 + $0x8] sm:$0xff pattern:$0x75316420]
      %v301 = vpack.c.bf16 %v298, %v297
      %302 = vst [vmem:[#allocation1] ss:$2 sm:$0xff] %v172
      %v303 = vld.sshfl [vmem:[#allocation1] sm:$0xff pattern:$0x75316420]
      %v304 = vld.sshfl [vmem:[#allocation1 + $0x8] sm:$0xff pattern:$0x75316420]
      %307 = vrot.lane.b32.xlu0 %v303, 127
      %v308 = vpop.permute.xlu0 %307
      %309 = vrot.lane.b32.xlu0 %v304, 127
      %v310 = vpop.permute.xlu0 %309
      %vm311 = vcmp.lt.s32.totalorder %v182, 127
      %v312 = vsel %vm311, %v308, %v310
      %v313 = vsel %vm311, %v310, %v308
      %v314 = vsel %vm214, 1, 0
      %v315 = vsel %vm215, 1, 0
      %vm316 = vcmp.eq.s32.totalorder %v314, 1
      %vm317 = vcmp.eq.s32.totalorder %v315, 1
      %v318 = vsel %vm316, %v312, 0.0
      %v319 = vsel %vm317, %v313, 0.0
      %v320 = vpack.c.bf16 %v319, %v318
      %321 = vst [vmem:[#allocation1] ss:$2 sm:$0xff] %v172
      %v322 = vld.sshfl [vmem:[#allocation1] sm:$0xff pattern:$0x75316420]
      %v323 = vld.sshfl [vmem:[#allocation1 + $0x8] sm:$0xff pattern:$0x75316420]
      %326 = vrot.lane.b32.xlu0 %v322, 113
      %v327 = vpop.permute.xlu0 %326
      %328 = vrot.lane.b32.xlu0 %v323, 113
      %v329 = vpop.permute.xlu0 %328
      %vm330 = vcmp.lt.s32.totalorder %v182, 113
      %v331 = vsel %vm330, %v327, %v329
      %v332 = vsel %vm330, %v329, %v327
      %vm333 = vmand %vm210, %vm212
      %vm334 = vmand %vm211, %vm213
      %v335 = vsel %vm333, 1, 0
      %v336 = vsel %vm334, 1, 0
      %vm337 = vcmp.eq.s32.totalorder %v335, 1
      %vm338 = vcmp.eq.s32.totalorder %v336, 1
      %v339 = vsel %vm337, %v331, 0.0
      %v340 = vsel %vm338, %v332, 0.0
      %v341 = vpack.c.bf16 %v340, %v339
      %342 = vst [vmem:[#allocation1] ss:$2 sm:$0xff] %v172
      %v343 = vld.sshfl [vmem:[#allocation1] sm:$0xff pattern:$0x75316420]
      %v344 = vld.sshfl [vmem:[#allocation1 + $0x8] sm:$0xff pattern:$0x75316420]
      %347 = vrot.lane.b32.xlu0 %v343, 112
      %v348 = vpop.permute.xlu0 %347
      %349 = vrot.lane.b32.xlu0 %v344, 112
      %v350 = vpop.permute.xlu0 %349
      %vm351 = vcmp.lt.s32.totalorder %v182, 112
      %v352 = vsel %vm351, %v348, %v350
      %v353 = vsel %vm351, %v350, %v348
      %v354 = vsel %vm210, 1, 0
      %v355 = vsel %vm211, 1, 0
      %vm356 = vcmp.eq.s32.totalorder %v354, 1
      %vm357 = vcmp.eq.s32.totalorder %v355, 1
      %v358 = vsel %vm356, %v352, 0.0
      %v359 = vsel %vm357, %v353, 0.0
      %v360 = vpack.c.bf16 %v359, %v358
      %361 = vst [vmem:[#allocation1] ss:$2 sm:$0xff] %v172
      %v362 = vld.sshfl [vmem:[#allocation1] sm:$0xff pattern:$0x75316420]
      %v363 = vld.sshfl [vmem:[#allocation1 + $0x8] sm:$0xff pattern:$0x75316420]
      %366 = vrot.lane.b32.xlu0 %v362, 111
      %v367 = vpop.permute.xlu0 %366
      %368 = vrot.lane.b32.xlu0 %v363, 111
      %v369 = vpop.permute.xlu0 %368
      %vm370 = vcmp.lt.s32.totalorder %v182, 111
      %v371 = vsel %vm370, %v367, %v369
      %v372 = vsel %vm370, %v369, %v367
      %vm373 = vmand %vm210, %vm214
      %vm374 = vmand %vm211, %vm215
      %v375 = vsel %vm373, 1, 0
      %v376 = vsel %vm374, 1, 0
      %vm377 = vcmp.eq.s32.totalorder %v375, 1
      %vm378 = vcmp.eq.s32.totalorder %v376, 1
      %v379 = vsel %vm377, %v371, 0.0
      %v380 = vsel %vm378, %v372, 0.0
      %v381 = vpack.c.bf16 %v380, %v379
      %v383 = vunpack.c.l.b16 %v236
      %v384 = vunpack.c.h.b16 %v236
      %v385 = vpack.c.b16 %v383, %v383
      %v386 = vpack.c.b16 %v384, %v384
      %v388 = vunpack.c.l.b16 %v255
      %v389 = vunpack.c.h.b16 %v255
      %v390 = vpack.c.b16 %v388, %v388
      %v391 = vpack.c.b16 %v389, %v389
      %v392 = vrot.slane %v390, 6
      %v393 = vrot.slane %v391, 6
      %v395 = vunpack.c.l.b16 %v276
      %v396 = vunpack.c.h.b16 %v276
      %v397 = vpack.c.b16 %v395, %v395
      %v398 = vpack.c.b16 %v396, %v396
      %v400 = vunpack.c.l.b16 %v295
      %v401 = vunpack.c.h.b16 %v295
      %v402 = vpack.c.b16 %v400, %v400
      %v403 = vpack.c.b16 %v401, %v401
      %v404 = vrot.slane %v402, 2
      %v405 = vrot.slane %v403, 2
      %v407 = vunpack.c.l.b16 %v301
      %v408 = vunpack.c.h.b16 %v301
      %v409 = vpack.c.b16 %v407, %v407
      %v410 = vpack.c.b16 %v408, %v408
      %v412 = vunpack.c.l.b16 %v320
      %v413 = vunpack.c.h.b16 %v320
      %v414 = vpack.c.b16 %v412, %v412
      %v415 = vpack.c.b16 %v413, %v413
      %v416 = vrot.slane %v414, 6
      %v417 = vrot.slane %v415, 6
      %v419 = vunpack.c.l.b16 %v341
      %v420 = vunpack.c.h.b16 %v341
      %v421 = vpack.c.b16 %v419, %v419
      %v422 = vpack.c.b16 %v420, %v420
      %v424 = vunpack.c.l.b16 %v360
      %v425 = vunpack.c.h.b16 %v360
      %v426 = vpack.c.b16 %v424, %v424
      %v427 = vpack.c.b16 %v425, %v425
      %v428 = vrot.slane %v426, 2
      %v429 = vrot.slane %v427, 2
      %v431 = vunpack.c.l.b16 %v381
      %v432 = vunpack.c.h.b16 %v381
      %v433 = vpack.c.b16 %v431, %v431
      %v434 = vpack.c.b16 %v432, %v432
      %vm435 = vcmask 1041408
      %v438 = vsel %vm435, %v385, %v392
      %v441 = vsel %vm435, %v386, %v393
      %vm442 = vcmask 1043456
      %v444 = vsel %vm442, %v438, %v397
      %v446 = vsel %vm442, %v441, %v398
      %vm447 = vcmask 1045504
      %v449 = vsel %vm447, %v444, %v404
      %v452 = vsel %vm447, %v446, %v405
      %v456 = vsel %vm435, %v409, %v416
      %v459 = vsel %vm435, %v410, %v417
      %v461 = vsel %vm442, %v456, %v421
      %v463 = vsel %vm442, %v459, %v422
      %v465 = vsel %vm447, %v461, %v428
      %v468 = vsel %vm447, %v463, %v429
      %v470 = vld [vmem:[%s1] sm:$0xf]
      %v471 = vld [vmem:[%s2] sm:$0xff]
      %473 = vset.pattern.permute.xlu0 0
      %474 = vperm.xlu0 %473, %v471
      %v475 = vpop.permute.xlu0 %474
      %vm477 = vcmask 293888
      %v479 = vsel %vm477, %v470, 0
      %v482 = vsel %vm435, %v433, 0
      %v485 = vsel %vm435, %v434, 0
      %487 = vmatpush.bf16.msra.mxu0 0
      %488 = vmatpush.bf16.msra.mxu0 0
      %489 = vmatpush.bf16.msra.mxu0 0
      %490 = vmatpush.bf16.msra.mxu0 0
      %491 = vmatpush.bf16.msra.mxu0 0
      %492 = vmatpush.bf16.msra.mxu0 %v482
      %493 = vmatpush.bf16.msra.mxu0 %v465
      %494 = vmatpush.bf16.msra.mxu0 %v449
      %495 = vmatmul.bf16.gmra.mxu0 %v479
      %v496 = vpop.f32.mrf.mxu0
      %v497 = vadd.f32 %v475, %v496
      %v498 = vpop.f32.mrf.mxu0
      %499 = vdwg.mxu0
      %500 = vmatpush.bf16.msra.mxu0 0
      %501 = vmatpush.bf16.msra.mxu0 0
      %502 = vmatpush.bf16.msra.mxu0 0
      %503 = vmatpush.bf16.msra.mxu0 0
      %504 = vmatpush.bf16.msra.mxu0 0
      %505 = vmatpush.bf16.msra.mxu0 %v485
      %506 = vmatpush.bf16.msra.mxu0 %v468
      %507 = vmatpush.bf16.msra.mxu0 %v452
      %508 = vmatmul.bf16.gmra.mxu0 %v479
      %v509 = vpop.f32.mrf.mxu0
      %v510 = vadd.f32 %v475, %v509
      %v511 = vpop.f32.mrf.mxu0
      %512 = vdwg.mxu0
      %v513 = vmax.f32 %v497, 0.0
      %v514 = vmax.f32 %v510, 0.0
      %v517 = vrot.slane %v513, 4
      %v518 = vrot.slane %v514, 4
      %521 = vst [vmem:[%s170] sm:$0xf0] %v517
      %522 = vst [vmem:[%s170 + $0x8] sm:$0xf0] %v518
      %523 = vst [vmem:[%s170 + $0x10] sm:$0xf] %v517
      %524 = vst [vmem:[%s170 + $0x18] sm:$0xf] %v518
      %p525 = scmp.lt.s32.totalorder %s14, 1
      %s526 = scalar_select %p525, %s14, 1
      %s527 = smul.addr %s526, 4
      %s528 = smul.addr %s527, 8
      %s529 = scalar_lea.vmem %s3, %s528
      // Predicated region
      $region33: #{rdb_conv_pallas.1} parent=31 // pred_check
        %p530 = pneg %p100
      $region34: #{rdb_conv_pallas.1} parent=31 // pred_check_branch
        %532 = sbr.rel (%p530) target = $region36
      $region35: #{rdb_conv_pallas.1} parent=31 // pred_region
        _
      $region36: #{rdb_conv_pallas.1} parent=31 // pred_fallthru
        _
    $region32: #{rdb_conv_pallas.1} parent=5 // pred_fallthru
      _
    %p533 = scmp.le.s32.totalorder 2, %s9
    // Predicated region
    $region37: #{rdb_conv_pallas.1} parent=5 // pred_check
      %p534 = pneg %p533
    $region38: #{rdb_conv_pallas.1} parent=5 // pred_check_branch
      %536 = sbr.rel (%p534) target = $region40
    $region39: #{rdb_conv_pallas.1} parent=5 // pred_region
      %s537 = ssub.s32 %s9, 2
      // Predicated region
      $region41: #{rdb_conv_pallas.1} parent=39 // pred_check
        %p538 = pneg %p106
      $region42: #{rdb_conv_pallas.1} parent=39 // pred_check_branch
        %540 = sbr.rel (%p538) target = $region44
      $region43: #{rdb_conv_pallas.1} parent=39 // pred_region
        %p541 = scmp.lt.s32.totalorder %s15, 1
        %s542 = scalar_select %p541, %s15, 1
        %s543 = smul.addr %s542, 4
        %s544 = smul.addr %s543, 8
        %s545 = scalar_lea.vmem %s3, %s544
      $region44: #{rdb_conv_pallas.1} parent=39 // pred_fallthru
        _
    $region40: #{rdb_conv_pallas.1} parent=5 // pred_fallthru
      _
  $region6: #{rdb_conv_pallas.1} parent=0 // loop_footer
    %s13 = sadd.s32 1, %s9
  $region7: #{rdb_conv_pallas.1} parent=0 // loop_footer_branch
    %8 = sbr.rel target = $region3
  $region8: #{rdb_conv_pallas.1} parent=0 // loop_exit
    _

</llo_original>
